<compile_context>
chip_gen: v6e
topology: v6e:2x2x1
jax: 0.10.0
libtpu: 0.0.40
codegen_flags: <defaults>
</compile_context>

<pallas_src>
import numpy as np
import jax
import jax.numpy as jnp
from jax.experimental import pallas as pl
from jax.experimental.pallas import tpu as pltpu

CAM_VIEWS = ("Dashboard", "Right_side_window", "Rear_view")


# ---------------------------------------------------------------------------
# Pallas kernel: lane-dense broadcast add of a per-clip prompt over time.
#   x block      : (C, T_tile, H*W)
#   prompt block : (C, H*W)  -- broadcast over the temporal axis
# ---------------------------------------------------------------------------
def _add_prompt_kernel(x_ref, p_ref, o_ref):
    o_ref[...] = (x_ref[...] + p_ref[...][:, None, :]).astype(o_ref.dtype)


def _choose_t_tile(C, T, HW, itemsize, budget_bytes=4 * 1024 * 1024):
    """Largest divisor of T whose (C, t, H*W) block stays under the budget."""
    best = 1
    for t in range(1, T + 1):
        if T % t == 0 and C * t * HW * itemsize <= budget_bytes:
            best = t
    return best


def add_prompt(x, prompts):
    """x: [B, C, T, H, W]; prompts: [B, C, H, W] -> x + prompts[:, :, None]."""
    B, C, T, H, W = x.shape
    HW = H * W
    x2 = x.reshape(B, C, T, HW)          # lane-dense trailing dim
    p2 = prompts.astype(x.dtype).reshape(B, C, HW)
    t_tile = _choose_t_tile(C, T, HW, x.dtype.itemsize)

    out = pl.pallas_call(
        _add_prompt_kernel,
        out_shape=jax.ShapeDtypeStruct((B, C, T, HW), x.dtype),
        grid_spec=pltpu.PrefetchScalarGridSpec(
            num_scalar_prefetch=0,
            grid=(B, T // t_tile),
            in_specs=[
                # one (C, T_tile, H*W) slab of the video per grid step
                pl.BlockSpec((None, C, t_tile, HW), lambda b, t: (b, 0, t, 0)),
                # per-clip prompt; constant along the inner T axis -> resident
                pl.BlockSpec((None, C, HW), lambda b, t: (b, 0, 0)),
            ],
            out_specs=pl.BlockSpec((None, C, t_tile, HW),
                                   lambda b, t: (b, 0, t, 0)),
        ),
        compiler_params=pltpu.CompilerParams(
            dimension_semantics=("parallel", "parallel"),
            vmem_limit_bytes=32 * 1024 * 1024,
        ),
    )(x2, p2)
    return out.reshape(B, C, T, H, W)


# ---------------------------------------------------------------------------
# Parameter init + per-clip prompt assembly (matches the PyTorch module).
# ---------------------------------------------------------------------------
def init_prompt_params(key, image_size, max_pad_size, dtype=jnp.float32):
    crop = image_size - 2 * max_pad_size
    shapes = {
        "pad_up_size_1":    (3, 1, 1, image_size),
        "pad_up_size_10":   (3, 1, 10, image_size),
        "pad_down_size_1":  (3, 1, 1, image_size),
        "pad_down_size_10": (3, 1, 10, image_size),
        "pad_left_size_1":   (3, 1, crop, 1),
        "pad_left_size_10":  (3, 1, crop, 10),
        "pad_right_size_1":  (3, 1, crop, 1),
        "pad_right_size_10": (3, 1, crop, 10),
    }
    keys = jax.random.split(key, len(shapes) * len(CAM_VIEWS))
    params, i = {}, 0
    for name, shape in shapes.items():
        params[name] = {}
        for view in CAM_VIEWS:
            params[name][view] = jax.random.normal(keys[i], shape, dtype)
            i += 1
    return params


def _build_clip_prompt(params, cam_view, image_size, max_pad_size,
                       offset_right, offset_down):
    """Assemble one [3, H, W] prompt from size-10 / size-1 pad params."""
    # TODO(synk): dynamic-width concatenation driven by per-clip random offsets
    # has no static-shape Pallas equivalent; it is done here in plain JAX
    # (Python-int shapes), exactly mirroring the torch.cat logic.
    crop = image_size - 2 * max_pad_size
    offset_left = max_pad_size * 2 - offset_right
    offset_up = max_pad_size * 2 - offset_down

    n10_l, n1_l = offset_left // 10, offset_left % 10
    n10_r, n1_r = offset_right // 10, offset_right % 10
    n10_u, n1_u = offset_up // 10, offset_up % 10
    n10_d, n1_d = offset_down // 10, offset_down % 10

    p = {k: v[cam_view] for k, v in params.items()}
    pad_left = jnp.concatenate(
        n10_l * [p["pad_left_size_10"]] + n1_l * [p["pad_left_size_1"]], axis=3)
    pad_right = jnp.concatenate(
        n1_r * [p["pad_right_size_1"]] + n10_r * [p["pad_right_size_10"]], axis=3)
    pad_up = jnp.concatenate(
        n10_u * [p["pad_up_size_10"]] + n1_u * [p["pad_up_size_1"]], axis=2)
    pad_down = jnp.concatenate(
        n1_d * [p["pad_down_size_1"]] + n10_d * [p["pad_down_size_10"]], axis=2)

    base = jnp.zeros((3, 1, crop, crop), p["pad_left_size_1"].dtype)
    mid = jnp.concatenate([pad_left, base, pad_right], axis=3)   # [3,1,crop,W]
    full = jnp.concatenate([pad_up, mid, pad_down], axis=2)      # [3,1,H,W]
    return full[:, 0]                                            # [3, H, W]


def forward(x, cam_views, params, image_size, max_pad_size, rng=None):
    """Equivalent of MultiCamNoiseCropV2Prompter.forward -> [x + prompt]."""
    assert x.shape[0] == len(cam_views), (
        f"len of cam_views does not match batch size of x; "
        f"expected {x.shape[0]}, got {len(cam_views)} instead")
    if rng is None:
        rng = np.random
    clip_prompts = []
    for clip_idx in range(x.shape[0]):
        cam_view = cam_views[clip_idx]
        offset_right = int(rng.randint(1, max_pad_size + 1))
        offset_down = int(rng.randint(1, max_pad_size + 1))
        clip_prompts.append(
            _build_clip_prompt(params, cam_view, image_size, max_pad_size,
                               offset_right, offset_down))
    prompts = jnp.stack(clip_prompts, axis=0)     # [B, 3, H, W]
    return [add_prompt(x, prompts)]


if __name__ == "__main__":
    # Small, module-consistent shapes.
    image_size = 32       # args.image_size (TRAIN_CROP_SIZE)
    max_pad_size = 4      # args.prompt_size
    B, C, T = 2, 3, 4     # batch, RGB channels, temporal frames
    H = W = image_size

    key = jax.random.PRNGKey(0)
    k_params, k_x = jax.random.split(key)
    params = init_prompt_params(k_params, image_size, max_pad_size)
    x = jax.random.normal(k_x, (B, C, T, H, W), jnp.float32)
    cam_views = ["Dashboard", "Rear_view"]

    rng = np.random.RandomState(0)
    out = forward(x, cam_views, params, image_size, max_pad_size, rng=rng)
    y = jax.block_until_ready(out[0])

    # Pure-JAX reference with identical random offsets.
    rng_ref = np.random.RandomState(0)
    ref_prompts = []
    for b in range(B):
        o_r = int(rng_ref.randint(1, max_pad_size + 1))
        o_d = int(rng_ref.randint(1, max_pad_size + 1))
        ref_prompts.append(
            _build_clip_prompt(params, cam_views[b], image_size, max_pad_size,
                               o_r, o_d))
    ref = x + jnp.stack(ref_prompts, axis=0)[:, :, None, :, :]

    assert y.shape == x.shape and y.dtype == x.dtype
    assert jnp.allclose(y, ref, atol=1e-6), "mismatch vs reference"

    print("KERNEL_OK")
</pallas_src>

<mosaic_0001>
module attributes {stable_mosaic.version = 11 : i64} {
  func.func @_add_prompt_kernel(%arg0: i32, %arg1: i32, %arg2: memref<1x3x4x1024xf32, #tpu.memory_space<vmem>>, %arg3: memref<1x3x1024xf32, #tpu.memory_space<vmem>>, %arg4: memref<1x3x4x1024xf32, #tpu.memory_space<vmem>>) attributes {dimension_semantics = [#tpu.dimension_semantics<parallel>, #tpu.dimension_semantics<parallel>], iteration_bounds = array<i64: 2, 1>, scalar_prefetch = 0 : i64, scratch_operands = 0 : i64, tpu.core_type = #tpu.core_type<tc>, window_params = [{transform_indices = @transform_0, window_bounds = array<i64: 1, 3, 4, 1024>}, {transform_indices = @transform_1, window_bounds = array<i64: 1, 3, 1024>}, {transform_indices = @transform_2, window_bounds = array<i64: 1, 3, 4, 1024>}]} {
    %c0 = arith.constant 0 : index
    %c0_0 = arith.constant 0 : index
    %c0_1 = arith.constant 0 : index
    %c0_2 = arith.constant 0 : index
    %0 = vector.load %arg2[%c0, %c0_0, %c0_1, %c0_2] : memref<1x3x4x1024xf32, #tpu.memory_space<vmem>>, vector<1x3x4x1024xf32>
    %1 = vector.shape_cast %0 : vector<1x3x4x1024xf32> to vector<3x4x1024xf32>
    %c0_3 = arith.constant 0 : index
    %c0_4 = arith.constant 0 : index
    %c0_5 = arith.constant 0 : index
    %2 = vector.load %arg3[%c0_3, %c0_4, %c0_5] : memref<1x3x1024xf32, #tpu.memory_space<vmem>>, vector<1x3x1024xf32>
    %3 = vector.shape_cast %2 : vector<1x3x1024xf32> to vector<3x1024xf32>
    %4 = vector.shape_cast %3 : vector<3x1024xf32> to vector<3x1x1024xf32>
    %5 = vector.broadcast %4 : vector<3x1x1024xf32> to vector<3x4x1024xf32>
    %6 = arith.addf %1, %5 : vector<3x4x1024xf32>
    %c0_6 = arith.constant 0 : index
    %c0_7 = arith.constant 0 : index
    %c0_8 = arith.constant 0 : index
    %c0_9 = arith.constant 0 : index
    %7 = vector.load %arg4[%c0_6, %c0_7, %c0_8, %c0_9] : memref<1x3x4x1024xf32, #tpu.memory_space<vmem>>, vector<1x3x4x1024xf32>
    %8 = vector.shape_cast %7 : vector<1x3x4x1024xf32> to vector<3x4x1024xf32>
    %9 = vector.shape_cast %6 : vector<3x4x1024xf32> to vector<1x3x4x1024xf32>
    tpu.vector_store %arg4[%c0_6, %c0_7, %c0_8, %c0_9], %9 {strides = array<i32>} : memref<1x3x4x1024xf32, #tpu.memory_space<vmem>>, vector<1x3x4x1024xf32>,
    return
  }
  func.func @transform_0(%arg0: i32, %arg1: i32) -> (i32, i32, i32, i32) {
    %c0_i32 = arith.constant 0 : i32
    %c0_i32_0 = arith.constant 0 : i32
    %c0_i32_1 = arith.constant 0 : i32
    return %arg0, %c0_i32, %arg1, %c0_i32_0 : i32, i32, i32, i32
  }
  func.func @transform_1(%arg0: i32, %arg1: i32) -> (i32, i32, i32) {
    %c0_i32 = arith.constant 0 : i32
    %c0_i32_0 = arith.constant 0 : i32
    %c0_i32_1 = arith.constant 0 : i32
    return %arg0, %c0_i32, %c0_i32_0 : i32, i32, i32
  }
  func.func @transform_2(%arg0: i32, %arg1: i32) -> (i32, i32, i32, i32) {
    %c0_i32 = arith.constant 0 : i32
    %c0_i32_0 = arith.constant 0 : i32
    %c0_i32_1 = arith.constant 0 : i32
    return %arg0, %c0_i32, %arg1, %c0_i32_0 : i32, i32, i32, i32
  }
}

</mosaic_0001>

<llo_original>
// kernel: tpu_custom_call.1
$region0: #{tpu_custom_call.1}
  #allocation0 [shape = 'u32[]', space=smem, size = 0x4, offset = 0x4, fixed_abs, tag = 'smem constant byte address 0x4 - core index']
  #allocation1 [shape = 'u32[144,128]{1,0:T(1,128)}', space=vmem, size = 0x12000, scoped, tag = 'internal scratch']
  %s0 = inlined_call_operand.hbm [shape: f32[2,3,4,1024], index: 0, kind: input, shape index: {}]
  %s1 = inlined_call_operand.vmem [shape: f32[2,3,1024], index: 1, kind: input, shape index: {}]
  %s2 = inlined_call_operand.hbm [shape: f32[2,3,4,1024], index: 2, kind: output, shape index: {}]
  %s3 = sld [smem:[#allocation0]]
  $region45: #{tpu_custom_call.1} parent=0
    _
  %s5 = ssub.s32 1, %s3
  %s6 = scalar_select 0, %s5, %s3
  $region1: #{tpu_custom_call.1} parent=0
    #allocation2 [shape = 'u8[98304]{0}', space=vmem, size = 0x18000, scoped, tag = 'input window, operand 0']
    #allocation3 [shape = 's32[2]{0}', space=sflag, size = 0x8, scoped, tag = 'scoped memory for tpu_custom_call.1']
    #allocation4 [shape = 's32[2]{0}', space=sflag, size = 0x8, scoped, tag = 'scoped memory for tpu_custom_call.1']
    #allocation5 [shape = 'u8[98304]{0}', space=vmem, size = 0x18000, scoped, tag = 'output window, operand 0']
    %7 = vsyncpa [#allocation3], 0
    %s8 = scalar_lea.sflag [#allocation3], 1
    %9 = vsyncpa %s8, 0
    %10 = vsyncpa [#allocation4], 0
    %s11 = scalar_lea.sflag [#allocation4], 1
    %12 = vsyncpa %s11, 0
    loop: start=0, step=1, limit=4
    $region2: #{tpu_custom_call.1} parent=1 // loop_pre_header
      _
    $region3: #{tpu_custom_call.1} parent=1 // loop_header
      %s14 = sphi 0, %s18
      %p15 = scmp.ge.s32.totalorder %s14, 4
      %s21 = sphi 0, %s33
      %s22 = sphi 0, %s29
      %s23 = sphi 0, %s21
      %s24 = sphi 0, %s22
      %s25 = sphi 0, %s23
      %s26 = sphi 0, %s24
      %s38 = sphi 0, %s40
      %s41 = sphi 0, %s38
      %s42 = sphi 0, %s41
      %s58 = sphi 0, %s42
      %s64 = sphi 0, %s66
      %s67 = sphi 0, %s64
      %s68 = sphi 0, %s67
      %s84 = sphi 0, %s68
      %s92 = sphi 0, %s94
      %s95 = sphi 0, %s92
      %s96 = sphi 0, %s95
      %s112 = sphi 0, %s96
    $region4: #{tpu_custom_call.1} parent=1 // loop_header_branch
      %17 = sbr.rel (%p15) target = $region8
    $region5: #{tpu_custom_call.1} parent=1 // loop_body
      %s19 = ssub.s32 %s14, 1
      %s20 = ssub.s32 %s14, 2
      %s27 = sadd.s32 1, %s22
      %p28 = scmp.ge.s32.totalorder %s27, 1
      %s29 = scalar_select %p28, 0, %s27
      %s30 = sadd.s32 1, %s21
      %s31 = scalar_select %p28, %s30, %s21
      %p32 = scmp.ge.s32.totalorder %s31, 2
      %s33 = scalar_select %p32, 0, %s31
      %s34 = ssub.s32 %s21, %s33
      %s35 = ssub.s32 %s22, %s29
      %s36 = sor.u32 %s34, %s35
      %p37 = scmp.eq.s32.totalorder %s36, 0
      %s39 = sadd.s32 %s38, 1
      %s40 = scalar_select %p37, %s38, %s39
      %p43 = pneg %p37
      %p44 = scmp.eq.s32.totalorder %s14, 1
      %p45 = por %p43, %p44
      %p46 = scmp.ne.s32.totalorder %s38, %s41
      %p47 = scmp.eq.s32.totalorder %s14, 0
      %p48 = por %p46, %p47
      %p49 = scmp.ne.s32.totalorder %s38, %s41
      %p50 = scmp.eq.s32.totalorder %s19, 1
      %p51 = por %p49, %p50
      %p52 = scmp.ne.s32.totalorder %s41, %s42
      %p53 = scmp.eq.s32.totalorder %s19, 0
      %p54 = por %p52, %p53
      %p55 = scmp.ne.s32.totalorder %s41, %s42
      %p56 = scmp.eq.s32.totalorder %s20, 1
      %p57 = por %p55, %p56
      %p59 = scmp.ne.s32.totalorder %s42, %s58
      %p60 = scmp.eq.s32.totalorder %s20, 0
      %p61 = por %p59, %p60
      %s62 = ssub.s32 %s21, %s33
      %p63 = scmp.eq.s32.totalorder %s62, 0
      %s65 = sadd.s32 %s64, 1
      %s66 = scalar_select %p63, %s64, %s65
      %p69 = pneg %p63
      %p70 = scmp.eq.s32.totalorder %s14, 1
      %p71 = por %p69, %p70
      %p72 = scmp.ne.s32.totalorder %s64, %s67
      %p73 = scmp.eq.s32.totalorder %s14, 0
      %p74 = por %p72, %p73
      %p75 = scmp.ne.s32.totalorder %s64, %s67
      %p76 = scmp.eq.s32.totalorder %s19, 1
      %p77 = por %p75, %p76
      %p78 = scmp.ne.s32.totalorder %s67, %s68
      %p79 = scmp.eq.s32.totalorder %s19, 0
      %p80 = por %p78, %p79
      %p81 = scmp.ne.s32.totalorder %s67, %s68
      %p82 = scmp.eq.s32.totalorder %s20, 1
      %p83 = por %p81, %p82
      %p85 = scmp.ne.s32.totalorder %s68, %s84
      %p86 = scmp.eq.s32.totalorder %s20, 0
      %p87 = por %p85, %p86
      %s88 = ssub.s32 %s21, %s33
      %s89 = ssub.s32 %s22, %s29
      %s90 = sor.u32 %s88, %s89
      %p91 = scmp.eq.s32.totalorder %s90, 0
      %s93 = sadd.s32 %s92, 1
      %s94 = scalar_select %p91, %s92, %s93
      %p97 = pneg %p91
      %p98 = scmp.eq.s32.totalorder %s14, 1
      %p99 = por %p97, %p98
      %p100 = scmp.ne.s32.totalorder %s92, %s95
      %p101 = scmp.eq.s32.totalorder %s14, 0
      %p102 = por %p100, %p101
      %p103 = scmp.ne.s32.totalorder %s92, %s95
      %p104 = scmp.eq.s32.totalorder %s19, 1
      %p105 = por %p103, %p104
      %p106 = scmp.ne.s32.totalorder %s95, %s96
      %p107 = scmp.eq.s32.totalorder %s19, 0
      %p108 = por %p106, %p107
      %p109 = scmp.ne.s32.totalorder %s95, %s96
      %p110 = scmp.eq.s32.totalorder %s20, 1
      %p111 = por %p109, %p110
      %p113 = scmp.ne.s32.totalorder %s96, %s112
      %p114 = scmp.eq.s32.totalorder %s20, 0
      %p115 = por %p113, %p114
      %p116 = scmp.le.s32.totalorder 1, %s14
      %p117 = scmp.lt.s32.totalorder %s14, 3
      %p118 = pnand %p116, %p117
      %p119 = pneg %p118
      // Predicated region
      $region9: #{tpu_custom_call.1} parent=5 // pred_check
        _
      $region10: #{tpu_custom_call.1} parent=5 // pred_check_branch
        %121 = sbr.rel (%p118) target = $region12
      $region11: #{tpu_custom_call.1} parent=5 // pred_region
        %s122 = ssub.s32 %s14, 1
      $region12: #{tpu_custom_call.1} parent=5 // pred_fallthru
        _
      %p123 = scmp.lt.s32.totalorder %s14, 2
      // Predicated region
      $region13: #{tpu_custom_call.1} parent=5 // pred_check
        %p124 = pneg %p123
      $region14: #{tpu_custom_call.1} parent=5 // pred_check_branch
        %126 = sbr.rel (%p124) target = $region16
      $region15: #{tpu_custom_call.1} parent=5 // pred_region
        // Predicated region
        $region17: #{tpu_custom_call.1} parent=15 // pred_check
          %p127 = pneg %p48
        $region18: #{tpu_custom_call.1} parent=15 // pred_check_branch
          %129 = sbr.rel (%p127) target = $region20
        $region19: #{tpu_custom_call.1} parent=15 // pred_region
          %s130 = sand.u32 %s38, 1
          %s131 = scalar_lea.sflag [#allocation3], %s130
          %s132 = sand.u32 %s38, 1
          %s133 = smul.addr %s132, 96
          %s134 = scalar_lea.vmem [#allocation2], %s133
          %s136 = ssub.s32 1536, 1536
          %137 = vsyncadd %s131, %s136
          %s138 = smul.addr %s22, 8
          %s139 = smul.addr %s21, 24
          %s140 = sadd.s32 %s138, %s139
          %s141 = smul.addr %s140, 64
          %s142 = scalar_lea.hbm %s0, %s141
          %s143 = sshll.u32 %s134, 4
          %s144 = int_to_ptr.vmem [resolvable:$true] %s143
          %149 = dma.hbm_to_vmem [thread:$0]  %s142, 1536, %s144, %s131, 512, 512, 32
        $region20: #{tpu_custom_call.1} parent=15 // pred_fallthru
          _
        // Predicated region
        $region21: #{tpu_custom_call.1} parent=15 // pred_check
          %p150 = pneg %p74
        $region22: #{tpu_custom_call.1} parent=15 // pred_check_branch
          %152 = sbr.rel (%p150) target = $region24
        $region23: #{tpu_custom_call.1} parent=15 // pred_region
          %p153 = scmp.lt.s32.totalorder %s21, 1
          %s154 = scalar_select %p153, %s21, 1
          %s155 = smul.addr %s154, 8
          %s156 = smul.addr %s155, 4
          %s157 = scalar_lea.vmem %s1, %s156
        $region24: #{tpu_custom_call.1} parent=15 // pred_fallthru
          _
      $region16: #{tpu_custom_call.1} parent=5 // pred_fallthru
        _
      %p158 = scmp.le.s32.totalorder 1, %s14
      %p159 = scmp.lt.s32.totalorder %s14, 3
      %p160 = pnand %p158, %p159
      %p161 = pneg %p160
      // Predicated region
      $region25: #{tpu_custom_call.1} parent=5 // pred_check
        _
      $region26: #{tpu_custom_call.1} parent=5 // pred_check_branch
        %163 = sbr.rel (%p160) target = $region28
      $region27: #{tpu_custom_call.1} parent=5 // pred_region
        %s164 = ssub.s32 %s14, 1
        %s165 = sand.u32 %s41, 1
        %s166 = scalar_lea.sflag [#allocation3], %s165
        %s167 = sand.u32 %s41, 1
        %s168 = smul.addr %s167, 96
        %s169 = scalar_lea.vmem [#allocation2], %s168
        // Predicated region
        $region29: #{tpu_custom_call.1} parent=27 // pred_check
          %p170 = pneg %p54
        $region30: #{tpu_custom_call.1} parent=27 // pred_check_branch
          %172 = sbr.rel (%p170) target = $region32
        $region31: #{tpu_custom_call.1} parent=27 // pred_region
          %173 = dma.done %s166, 1536
        $region32: #{tpu_custom_call.1} parent=27 // pred_fallthru
          _
        %s174 = sand.u32 %s41, 1
        %s175 = scalar_lea.sflag [#allocation3], %s174
        %s176 = sand.u32 %s41, 1
        %s177 = smul.addr %s176, 96
        %s178 = scalar_lea.vmem [#allocation2], %s177
        %p179 = pneg %p54
        %p180 = pneg %p51
        %p181 = scmp.lt.s32.totalorder %s23, 1
        %s182 = scalar_select %p181, %s23, 1
        %s183 = smul.addr %s182, 8
        %s184 = smul.addr %s183, 4
        %s185 = scalar_lea.vmem %s1, %s184
        %p186 = pneg %p80
        %p187 = pneg %p77
        %p188 = pneg %p108
        %p189 = pneg %p105
        %s190 = sand.u32 %s95, 1
        %s191 = scalar_lea.sflag [#allocation4], %s190
        %s192 = sand.u32 %s95, 1
        %s193 = smul.addr %s192, 96
        %s194 = scalar_lea.vmem [#allocation5], %s193
        %p195 = scmp.lt.s32.totalorder %s23, 1
        %s196 = scalar_select %p195, %s23, 1
        %s197 = smul.addr %s196, 8
        %s198 = smul.addr %s197, 4
        %s199 = scalar_lea.vmem %s1, %s198
        %v200 = vld [vmem:[%s169] sm:$0xff]
        %v201 = vld [vmem:[%s169 + $0x8] sm:$0xff]
        %v202 = vld [vmem:[%s169 + $0x10] sm:$0xff]
        %v203 = vld [vmem:[%s169 + $0x18] sm:$0xff]
        %v204 = vld [vmem:[%s169 + $0x20] sm:$0xff]
        %v205 = vld [vmem:[%s169 + $0x28] sm:$0xff]
        %v206 = vld [vmem:[%s169 + $0x30] sm:$0xff]
        %v207 = vld [vmem:[%s169 + $0x38] sm:$0xff]
        %v208 = vld [vmem:[%s169 + $0x40] sm:$0xff]
        %v209 = vld [vmem:[%s169 + $0x48] sm:$0xff]
        %v210 = vld [vmem:[%s169 + $0x50] sm:$0xff]
        %v211 = vld [vmem:[%s169 + $0x58] sm:$0xff]
        %v212 = vld [vmem:[%s199] sm:$0x77]
        %v213 = vld [vmem:[%s199 + $0x8] sm:$0x77]
        %v214 = vld [vmem:[%s199 + $0x10] sm:$0x77]
        %v215 = vld [vmem:[%s199 + $0x18] sm:$0x77]
        %v221 = vunpack.c.l.s4 1966171168
        %v222 = vunpack.c.0.s8 %v221
        %v223 = vlaneseq
        %v224 = vshrl.u32 %v223, 7
        %v225 = vsub.s32 %v222, %v224
        %v226 = vrot.slane %v212, %v225
        %v228 = vunpack.c.l.s4 1966171168
        %v229 = vunpack.c.0.s8 %v228
        %v230 = vlaneseq
        %v231 = vshrl.u32 %v230, 7
        %v232 = vsub.s32 %v229, %v231
        %v233 = vrot.slane %v213, %v232
        %v235 = vunpack.c.l.s4 1966171168
        %v236 = vunpack.c.0.s8 %v235
        %v237 = vlaneseq
        %v238 = vshrl.u32 %v237, 7
        %v239 = vsub.s32 %v236, %v238
        %v240 = vrot.slane %v214, %v239
        %v242 = vunpack.c.l.s4 1966171168
        %v243 = vunpack.c.0.s8 %v242
        %v244 = vlaneseq
        %v245 = vshrl.u32 %v244, 7
        %v246 = vsub.s32 %v243, %v245
        %v247 = vrot.slane %v215, %v246
        %v248 = vcombine.low %v226, %v233
        %v249 = vcombine.high %v226, %v233
        %v250 = vcombine.low %v240, %v247
        %v251 = vcombine.high %v240, %v247
        %v253 = vunpack.c.l.s4 1966171168
        %v254 = vunpack.c.0.s8 %v253
        %v255 = vlaneseq
        %v256 = vshrl.u32 %v255, 7
        %v257 = vsub.s32 %v254, %v256
        %v258 = vrot.slane %v248, %v257
        %v260 = vunpack.c.l.s4 1966171168
        %v261 = vunpack.c.0.s8 %v260
        %v262 = vlaneseq
        %v263 = vshrl.u32 %v262, 7
        %v264 = vsub.s32 %v261, %v263
        %v265 = vrot.slane %v249, %v264
        %v267 = vunpack.c.l.s4 1966171168
        %v268 = vunpack.c.0.s8 %v267
        %v269 = vlaneseq
        %v270 = vshrl.u32 %v269, 7
        %v271 = vsub.s32 %v268, %v270
        %v272 = vrot.slane %v250, %v271
        %v274 = vunpack.c.l.s4 1966171168
        %v275 = vunpack.c.0.s8 %v274
        %v276 = vlaneseq
        %v277 = vshrl.u32 %v276, 7
        %v278 = vsub.s32 %v275, %v277
        %v279 = vrot.slane %v251, %v278
        %v280 = vcombine.low %v258, %v272
        %v281 = vcombine.high %v258, %v272
        %v282 = vcombine.low %v265, %v279
        %v283 = vlaneseq
        %v284 = vshrl.u32 %v283, 7
        %v285 = vsub.s32 0, %v284
        %v286 = vrot.slane %v280, %v285
        %v287 = vlaneseq
        %v288 = vshrl.u32 %v287, 7
        %v289 = vsub.s32 1, %v288
        %v290 = vrot.slane %v280, %v289
        %v291 = vlaneseq
        %v292 = vshrl.u32 %v291, 7
        %v293 = vsub.s32 2, %v292
        %v294 = vrot.slane %v280, %v293
        %v295 = vlaneseq
        %v296 = vshrl.u32 %v295, 7
        %v297 = vsub.s32 3, %v296
        %v298 = vrot.slane %v280, %v297
        %v299 = vlaneseq
        %v300 = vshrl.u32 %v299, 7
        %v301 = vsub.s32 4, %v300
        %v302 = vrot.slane %v280, %v301
        %v303 = vlaneseq
        %v304 = vshrl.u32 %v303, 7
        %v305 = vsub.s32 5, %v304
        %v306 = vrot.slane %v280, %v305
        %v307 = vlaneseq
        %v308 = vshrl.u32 %v307, 7
        %v309 = vsub.s32 6, %v308
        %v310 = vrot.slane %v280, %v309
        %v311 = vlaneseq
        %v312 = vshrl.u32 %v311, 7
        %v313 = vsub.s32 7, %v312
        %v314 = vrot.slane %v280, %v313
        %v315 = vlaneseq
        %v316 = vshrl.u32 %v315, 7
        %v317 = vsub.s32 0, %v316
        %v318 = vrot.slane %v282, %v317
        %v319 = vlaneseq
        %v320 = vshrl.u32 %v319, 7
        %v321 = vsub.s32 1, %v320
        %v322 = vrot.slane %v282, %v321
        %v323 = vlaneseq
        %v324 = vshrl.u32 %v323, 7
        %v325 = vsub.s32 2, %v324
        %v326 = vrot.slane %v282, %v325
        %v327 = vlaneseq
        %v328 = vshrl.u32 %v327, 7
        %v329 = vsub.s32 3, %v328
        %v330 = vrot.slane %v282, %v329
        %v331 = vlaneseq
        %v332 = vshrl.u32 %v331, 7
        %v333 = vsub.s32 4, %v332
        %v334 = vrot.slane %v282, %v333
        %v335 = vlaneseq
        %v336 = vshrl.u32 %v335, 7
        %v337 = vsub.s32 5, %v336
        %v338 = vrot.slane %v282, %v337
        %v339 = vlaneseq
        %v340 = vshrl.u32 %v339, 7
        %v341 = vsub.s32 6, %v340
        %v342 = vrot.slane %v282, %v341
        %v343 = vlaneseq
        %v344 = vshrl.u32 %v343, 7
        %v345 = vsub.s32 7, %v344
        %v346 = vrot.slane %v282, %v345
        %v347 = vlaneseq
        %v348 = vshrl.u32 %v347, 7
        %v349 = vsub.s32 0, %v348
        %v350 = vrot.slane %v281, %v349
        %v351 = vlaneseq
        %v352 = vshrl.u32 %v351, 7
        %v353 = vsub.s32 1, %v352
        %v354 = vrot.slane %v281, %v353
        %v355 = vlaneseq
        %v356 = vshrl.u32 %v355, 7
        %v357 = vsub.s32 2, %v356
        %v358 = vrot.slane %v281, %v357
        %v359 = vlaneseq
        %v360 = vshrl.u32 %v359, 7
        %v361 = vsub.s32 3, %v360
        %v362 = vrot.slane %v281, %v361
        %v363 = vlaneseq
        %v364 = vshrl.u32 %v363, 7
        %v365 = vsub.s32 4, %v364
        %v366 = vrot.slane %v281, %v365
        %v367 = vlaneseq
        %v368 = vshrl.u32 %v367, 7
        %v369 = vsub.s32 5, %v368
        %v370 = vrot.slane %v281, %v369
        %v371 = vlaneseq
        %v372 = vshrl.u32 %v371, 7
        %v373 = vsub.s32 6, %v372
        %v374 = vrot.slane %v281, %v373
        %v375 = vlaneseq
        %v376 = vshrl.u32 %v375, 7
        %v377 = vsub.s32 7, %v376
        %v378 = vrot.slane %v281, %v377
        %v379 = vcombine.low %v286, %v290
        %v380 = vcombine.low %v294, %v298
        %v381 = vcombine.low %v302, %v306
        %v382 = vcombine.low %v310, %v314
        %v383 = vcombine.low %v318, %v322
        %v384 = vcombine.low %v326, %v330
        %v385 = vcombine.low %v334, %v338
        %v386 = vcombine.low %v342, %v346
        %v387 = vcombine.low %v350, %v354
        %v388 = vcombine.low %v358, %v362
        %v389 = vcombine.low %v366, %v370
        %v390 = vcombine.low %v374, %v378
        %v403 = vadd.f32 %v200, %v379
        %v404 = vadd.f32 %v201, %v380
        %v405 = vadd.f32 %v202, %v381
        %v406 = vadd.f32 %v203, %v382
        %v407 = vadd.f32 %v204, %v383
        %v408 = vadd.f32 %v205, %v384
        %v409 = vadd.f32 %v206, %v385
        %v410 = vadd.f32 %v207, %v386
        %v411 = vadd.f32 %v208, %v387
        %v412 = vadd.f32 %v209, %v388
        %v413 = vadd.f32 %v210, %v389
        %v414 = vadd.f32 %v211, %v390
        %415 = vst [vmem:[%s194] sm:$0xff] %v403
        %416 = vst [vmem:[%s194 + $0x8] sm:$0xff] %v404
        %417 = vst [vmem:[%s194 + $0x10] sm:$0xff] %v405
        %418 = vst [vmem:[%s194 + $0x18] sm:$0xff] %v406
        %419 = vst [vmem:[%s194 + $0x20] sm:$0xff] %v407
        %420 = vst [vmem:[%s194 + $0x28] sm:$0xff] %v408
        %421 = vst [vmem:[%s194 + $0x30] sm:$0xff] %v409
        %422 = vst [vmem:[%s194 + $0x38] sm:$0xff] %v410
        %423 = vst [vmem:[%s194 + $0x40] sm:$0xff] %v411
        %424 = vst [vmem:[%s194 + $0x48] sm:$0xff] %v412
        %425 = vst [vmem:[%s194 + $0x50] sm:$0xff] %v413
        %426 = vst [vmem:[%s194 + $0x58] sm:$0xff] %v414
        %s427 = sand.u32 %s95, 1
        %s428 = scalar_lea.sflag [#allocation4], %s427
        %s429 = sand.u32 %s95, 1
        %s430 = smul.addr %s429, 96
        %s431 = scalar_lea.vmem [#allocation5], %s430
        // Predicated region
        $region33: #{tpu_custom_call.1} parent=27 // pred_check
          %p432 = pneg %p105
        $region34: #{tpu_custom_call.1} parent=27 // pred_check_branch
          %434 = sbr.rel (%p432) target = $region36
        $region35: #{tpu_custom_call.1} parent=27 // pred_region
          %s436 = ssub.s32 1536, 1536
          %437 = vsyncadd %s428, %s436
          %s438 = smul.addr %s24, 8
          %s439 = smul.addr %s23, 24
          %s440 = sadd.s32 %s438, %s439
          %s441 = smul.addr %s440, 64
          %s442 = scalar_lea.hbm %s2, %s441
          %s443 = sshll.u32 %s431, 4
          %s444 = int_to_ptr.vmem [resolvable:$true] %s443
          %449 = dma.vmem_to_hbm [thread:$0]  %s444, 1536, %s442, %s428, 512, 512, 32
        $region36: #{tpu_custom_call.1} parent=27 // pred_fallthru
          _
      $region28: #{tpu_custom_call.1} parent=5 // pred_fallthru
        _
      %p450 = scmp.le.s32.totalorder 2, %s14
      // Predicated region
      $region37: #{tpu_custom_call.1} parent=5 // pred_check
        %p451 = pneg %p450
      $region38: #{tpu_custom_call.1} parent=5 // pred_check_branch
        %453 = sbr.rel (%p451) target = $region40
      $region39: #{tpu_custom_call.1} parent=5 // pred_region
        %s454 = ssub.s32 %s14, 2
        // Predicated region
        $region41: #{tpu_custom_call.1} parent=39 // pred_check
          %p455 = pneg %p111
        $region42: #{tpu_custom_call.1} parent=39 // pred_check_branch
          %457 = sbr.rel (%p455) target = $region44
        $region43: #{tpu_custom_call.1} parent=39 // pred_region
          %s458 = sand.u32 %s96, 1
          %s459 = scalar_lea.sflag [#allocation4], %s458
          %s460 = sand.u32 %s96, 1
          %s461 = smul.addr %s460, 96
          %s462 = scalar_lea.vmem [#allocation5], %s461
          %463 = dma.done %s459, 1536
        $region44: #{tpu_custom_call.1} parent=39 // pred_fallthru
          _
      $region40: #{tpu_custom_call.1} parent=5 // pred_fallthru
        _
    $region6: #{tpu_custom_call.1} parent=1 // loop_footer
      %s18 = sadd.s32 1, %s14
    $region7: #{tpu_custom_call.1} parent=1 // loop_footer_branch
      %13 = sbr.rel target = $region3
    $region8: #{tpu_custom_call.1} parent=1 // loop_exit
      _
    %464 = vsyncpa [#allocation3], 1
    %s465 = scalar_lea.sflag [#allocation3], 1
    %466 = vsyncpa %s465, 1
    %467 = vsyncpa [#allocation4], 1
    %s468 = scalar_lea.sflag [#allocation4], 1
    %469 = vsyncpa %s468, 1

</llo_original>
